<compile_context>
chip_gen: v6e
topology: v6e:2x2x1
jax: 0.10.0
libtpu: 0.0.40
codegen_flags: <defaults>
</compile_context>

<pallas_src>
import functools

import jax
import jax.numpy as jnp
from jax import lax
from jax.experimental import pallas as pl
from jax.experimental.pallas import tpu as pltpu


def _round_up(x, m):
    return ((x + m - 1) // m) * m


def _soft_ce_kernel(logits_ref, target_ref, out_ref, acc_ref, *,
                    n_valid, tb, size_average):
    i = pl.program_id(0)

    @pl.when(i == 0)
    def _init():
        acc_ref[...] = jnp.zeros_like(acc_ref)

    x = logits_ref[...].astype(jnp.float32)            # [TB, C]
    t = target_ref[...].astype(jnp.float32)            # [TB, C]

    # Numerically stable log-softmax over the class (lane) axis.
    m = jnp.max(x, axis=1, keepdims=True)              # [TB, 1]
    s = x - m
    lse = jnp.log(jnp.sum(jnp.exp(s), axis=1, keepdims=True))  # [TB, 1]
    logp = s - lse                                      # [TB, C]

    per_row = jnp.sum(-t * logp, axis=1, keepdims=True)  # [TB, 1]

    # Mask rows of a partial last tile (padded block data is garbage there).
    row = i * tb + lax.broadcasted_iota(jnp.int32, (tb, 1), 0)
    per_row = jnp.where(row < n_valid, per_row, 0.0)

    acc_ref[...] += jnp.sum(per_row, keepdims=True)     # (1, 1) f32 accumulate

    @pl.when(i == pl.num_programs(0) - 1)
    def _finish():
        scale = jnp.float32(1.0 / n_valid) if size_average else jnp.float32(1.0)
        out_ref[...] = acc_ref[...] * scale


def _hard_ce_kernel(logits_ref, labels_ref, out_ref, acc_ref, *,
                    n_valid, tb, size_average):
    i = pl.program_id(0)

    @pl.when(i == 0)
    def _init():
        acc_ref[...] = jnp.zeros_like(acc_ref)

    x = logits_ref[...].astype(jnp.float32)             # [TB, C]
    lbl = labels_ref[...]                                # [TB, 1] int32

    m = jnp.max(x, axis=1, keepdims=True)                # [TB, 1]
    s = x - m
    lse = jnp.log(jnp.sum(jnp.exp(s), axis=1, keepdims=True))  # [TB, 1]

    # Pick s[i, label_i] with an iota compare (no one-hot ever touches HBM).
    col = lax.broadcasted_iota(jnp.int32, x.shape, 1)    # [TB, C]
    picked = jnp.sum(jnp.where(col == lbl, s, 0.0), axis=1, keepdims=True)
    per_row = lse - picked                               # -log_softmax at label

    row = i * tb + lax.broadcasted_iota(jnp.int32, (tb, 1), 0)
    per_row = jnp.where(row < n_valid, per_row, 0.0)

    acc_ref[...] += jnp.sum(per_row, keepdims=True)

    @pl.when(i == pl.num_programs(0) - 1)
    def _finish():
        scale = jnp.float32(1.0 / n_valid) if size_average else jnp.float32(1.0)
        out_ref[...] = acc_ref[...] * scale


def _choose_batch_tile(B, C):
    # ~4 MiB per pipeline buffer at worst-case f32 itemsize: with 2 inputs x
    # 2 buffers this stays well inside the scoped-VMEM limits on v5e/v6e/v7x.
    target_bytes = 4 * 1024 * 1024
    tb = target_bytes // max(1, C * 4)
    tb = max(8, min(tb, 2048))
    tb = (tb // 8) * 8
    if B <= tb:
        tb = _round_up(max(B, 1), 8)
    return tb


def cutmix_cross_entropy_loss(logits, target, size_average=True,
                              batch_tile=None):
    """JAX/Pallas equivalent of CutMixCrossEntropyLoss.forward.

    logits: [B, C] float array (f32 or bf16 — kept narrow in HBM)
    target: [B] int labels  OR  [B, C] (soft) targets
    returns: scalar f32 loss
    """
    B, C = logits.shape
    tb = batch_tile if batch_tile is not None else _choose_batch_tile(B, C)
    assert tb % 8 == 0, "batch tile must be a multiple of 8"
    grid = (pl.cdiv(B, tb),)

    out_shape = jax.ShapeDtypeStruct((1, 1), jnp.float32)
    out_spec = pl.BlockSpec((1, 1), lambda i: (0, 0))          # resident across grid
    scratch = [pltpu.VMEM((1, 1), jnp.float32)]                # running sum
    compiler_params = pltpu.CompilerParams(
        dimension_semantics=("arbitrary",),                    # sequential reduction
        vmem_limit_bytes=32 * 1024 * 1024,
    )

    if target.ndim == 1:
        labels = target.astype(jnp.int32).reshape(B, 1)
        kernel = functools.partial(_hard_ce_kernel, n_valid=B, tb=tb,
                                   size_average=size_average)
        out = pl.pallas_call(
            kernel,
            out_shape=out_shape,
            grid=grid,
            in_specs=[
                pl.BlockSpec((tb, C), lambda i: (i, 0)),
                pl.BlockSpec((tb, 1), lambda i: (i, 0)),
            ],
            out_specs=out_spec,
            scratch_shapes=scratch,
            compiler_params=compiler_params,
        )(logits, labels)
    else:
        kernel = functools.partial(_soft_ce_kernel, n_valid=B, tb=tb,
                                   size_average=size_average)
        out = pl.pallas_call(
            kernel,
            out_shape=out_shape,
            grid=grid,
            in_specs=[
                pl.BlockSpec((tb, C), lambda i: (i, 0)),
                pl.BlockSpec((tb, C), lambda i: (i, 0)),
            ],
            out_specs=out_spec,
            scratch_shapes=scratch,
            compiler_params=compiler_params,
        )(logits, target)
    return out[0, 0]


if __name__ == "__main__":
    key = jax.random.PRNGKey(0)
    k1, k2, k3 = jax.random.split(key, 3)

    # Small CIFAR-100-style shapes: batch=20, classes=100.
    B, C = 20, 100
    logits = jax.random.normal(k1, (B, C), dtype=jnp.float32)
    labels = jax.random.randint(k2, (B,), 0, C, dtype=jnp.int32)
    soft = jax.nn.softmax(jax.random.normal(k3, (B, C), dtype=jnp.float32), -1)

    # Multi-tile (grid=3, ragged last tile) paths.
    loss_hard = cutmix_cross_entropy_loss(logits, labels, True, batch_tile=8)
    loss_soft = cutmix_cross_entropy_loss(logits, soft, True, batch_tile=8)
    loss_soft_sum = cutmix_cross_entropy_loss(logits, soft, False, batch_tile=8)
    # Auto tile selection (single padded tile) + bf16 logits path.
    loss_hard_auto = cutmix_cross_entropy_loss(logits, labels, True)
    logits_bf16 = logits.astype(jnp.bfloat16)
    loss_bf16 = cutmix_cross_entropy_loss(logits_bf16, labels, True, batch_tile=8)

    jax.block_until_ready(
        (loss_hard, loss_soft, loss_soft_sum, loss_hard_auto, loss_bf16))

    # Plain-JAX reference.
    def ref(lg, tgt, size_average=True):
        lg = lg.astype(jnp.float32)
        if tgt.ndim == 1:
            tgt = jax.nn.one_hot(tgt, lg.shape[-1], dtype=jnp.float32)
        pr = jnp.sum(-tgt * jax.nn.log_softmax(lg, axis=1), axis=1)
        return jnp.mean(pr) if size_average else jnp.sum(pr)

    assert jnp.allclose(loss_hard, ref(logits, labels, True), atol=1e-5, rtol=1e-5)
    assert jnp.allclose(loss_hard_auto, ref(logits, labels, True), atol=1e-5, rtol=1e-5)
    assert jnp.allclose(loss_soft, ref(logits, soft, True), atol=1e-5, rtol=1e-5)
    assert jnp.allclose(loss_soft_sum, ref(logits, soft, False), atol=1e-4, rtol=1e-5)
    assert jnp.allclose(loss_bf16, ref(logits_bf16, labels, True), atol=1e-4, rtol=1e-4)

    print("KERNEL_OK")
</pallas_src>

<mosaic_0001>
module attributes {stable_mosaic.version = 11 : i64} {
  func.func @_hard_ce_kernel(%arg0: i32, %arg1: memref<8x100xf32, #tpu.memory_space<vmem>>, %arg2: memref<8x1xi32, #tpu.memory_space<vmem>>, %arg3: memref<1x1xf32, #tpu.memory_space<vmem>>, %arg4: memref<1x1xf32, #tpu.memory_space<vmem>>) attributes {dimension_semantics = [#tpu.dimension_semantics<arbitrary>], iteration_bounds = array<i64: 3>, scalar_prefetch = 0 : i64, scratch_operands = 1 : i64, tpu.core_type = #tpu.core_type<tc>, window_params = [{transform_indices = @transform_0, window_bounds = array<i64: 8, 100>}, {transform_indices = @transform_1, window_bounds = array<i64: 8, 1>}, {pipeline_mode = #tpu.pipeline_mode<synchronous>, transform_indices = @transform_2, window_bounds = array<i64: 1, 1>}]} {
    %c0_i32 = arith.constant 0 : i32
    %0 = arith.cmpi eq, %arg0, %c0_i32 : i32
    %1 = arith.extui %0 : i1 to i32
    %c0_i32_0 = arith.constant 0 : i32
    %2 = arith.cmpi ne, %1, %c0_i32_0 : i32
    scf.if %2 {
      %cst_14 = arith.constant 0.000000e+00 : f32
      %40 = vector.broadcast %cst_14 : f32 to vector<1x1xf32>
      %c0_15 = arith.constant 0 : index
      %c0_16 = arith.constant 0 : index
      %41 = vector.load %arg4[%c0_15, %c0_16] : memref<1x1xf32, #tpu.memory_space<vmem>>, vector<1x1xf32>
      tpu.vector_store %arg4[%c0_15, %c0_16], %40 {strides = array<i32>} : memref<1x1xf32, #tpu.memory_space<vmem>>, vector<1x1xf32>,
    } else {
    }
    %c0 = arith.constant 0 : index
    %c0_1 = arith.constant 0 : index
    %3 = vector.load %arg1[%c0, %c0_1] : memref<8x100xf32, #tpu.memory_space<vmem>>, vector<8x100xf32>
    %c0_2 = arith.constant 0 : index
    %c0_3 = arith.constant 0 : index
    %4 = vector.load %arg2[%c0_2, %c0_3] : memref<8x1xi32, #tpu.memory_space<vmem>>, vector<8x1xi32>
    %cst = arith.constant dense<0xFF800000> : vector<8xf32>
    %5 = vector.multi_reduction <maximumf>, %3, %cst [1] : vector<8x100xf32> to vector<8xf32>
    %6 = vector.shape_cast %5 : vector<8xf32> to vector<8x1xf32>
    %7 = vector.broadcast %6 : vector<8x1xf32> to vector<8x100xf32>
    %8 = arith.subf %3, %7 : vector<8x100xf32>
    %9 = math.exp %8 : vector<8x100xf32>
    %cst_4 = arith.constant dense<0.000000e+00> : vector<8xf32>
    %10 = vector.multi_reduction <add>, %9, %cst_4 [1] : vector<8x100xf32> to vector<8xf32>
    %11 = vector.shape_cast %10 : vector<8xf32> to vector<8x1xf32>
    %12 = math.log %11 : vector<8x1xf32>
    %13 = tpu.iota {dimensions = array<i32: 1>} : vector<8x100xi32>
    %14 = vector.broadcast %4 : vector<8x1xi32> to vector<8x100xi32>
    %15 = arith.cmpi eq, %13, %14 : vector<8x100xi32>
    %cst_5 = arith.constant 0.000000e+00 : f32
    %16 = vector.broadcast %cst_5 : f32 to vector<8x100xf32>
    %17 = arith.select %15, %8, %16 : vector<8x100xi1>, vector<8x100xf32>
    %cst_6 = arith.constant dense<0.000000e+00> : vector<8xf32>
    %18 = vector.multi_reduction <add>, %17, %cst_6 [1] : vector<8x100xf32> to vector<8xf32>
    %19 = vector.shape_cast %18 : vector<8xf32> to vector<8x1xf32>
    %20 = arith.subf %12, %19 : vector<8x1xf32>
    %c8_i32 = arith.constant 8 : i32
    %21 = arith.muli %arg0, %c8_i32 : i32
    %22 = tpu.iota {dimensions = array<i32: 0>} : vector<8x1xi32>
    %23 = vector.broadcast %21 : i32 to vector<8x1xi32>
    %24 = arith.addi %23, %22 : vector<8x1xi32>
    %c20_i32 = arith.constant 20 : i32
    %25 = vector.broadcast %c20_i32 : i32 to vector<8x1xi32>
    %26 = arith.cmpi slt, %24, %25 : vector<8x1xi32>
    %cst_7 = arith.constant 0.000000e+00 : f32
    %27 = vector.broadcast %cst_7 : f32 to vector<8x1xf32>
    %28 = arith.select %26, %20, %27 : vector<8x1xi1>, vector<8x1xf32>
    %c0_8 = arith.constant 0 : index
    %c0_9 = arith.constant 0 : index
    %29 = vector.load %arg4[%c0_8, %c0_9] : memref<1x1xf32, #tpu.memory_space<vmem>>, vector<1x1xf32>
    %30 = vector.shape_cast %28 : vector<8x1xf32> to vector<1x8x1xf32>
    %cst_10 = arith.constant dense<0.000000e+00> : vector<1xf32>
    %31 = vector.multi_reduction <add>, %30, %cst_10 [1, 2] : vector<1x8x1xf32> to vector<1xf32>
    %32 = vector.shape_cast %31 : vector<1xf32> to vector<1x1x1xf32>
    %33 = vector.extract %32[0, 0, 0] : f32 from vector<1x1x1xf32>
    %34 = vector.broadcast %33 : f32 to vector<1x1xf32>
    %35 = arith.addf %29, %34 : vector<1x1xf32>
    %c0_11 = arith.constant 0 : index
    %c0_12 = arith.constant 0 : index
    %36 = vector.load %arg4[%c0_11, %c0_12] : memref<1x1xf32, #tpu.memory_space<vmem>>, vector<1x1xf32>
    tpu.vector_store %arg4[%c0_11, %c0_12], %35 {strides = array<i32>} : memref<1x1xf32, #tpu.memory_space<vmem>>, vector<1x1xf32>,
    %c2_i32 = arith.constant 2 : i32
    %37 = arith.cmpi eq, %arg0, %c2_i32 : i32
    %38 = arith.extui %37 : i1 to i32
    %c0_i32_13 = arith.constant 0 : i32
    %39 = arith.cmpi ne, %38, %c0_i32_13 : i32
    scf.if %39 {
      %c0_14 = arith.constant 0 : index
      %c0_15 = arith.constant 0 : index
      %40 = vector.load %arg4[%c0_14, %c0_15] : memref<1x1xf32, #tpu.memory_space<vmem>>, vector<1x1xf32>
      %cst_16 = arith.constant 5.000000e-02 : f32
      %41 = vector.broadcast %cst_16 : f32 to vector<1x1xf32>
      %42 = arith.mulf %40, %41 : vector<1x1xf32>
      %c0_17 = arith.constant 0 : index
      %c0_18 = arith.constant 0 : index
      %43 = vector.load %arg3[%c0_17, %c0_18] : memref<1x1xf32, #tpu.memory_space<vmem>>, vector<1x1xf32>
      tpu.vector_store %arg3[%c0_17, %c0_18], %42 {strides = array<i32>} : memref<1x1xf32, #tpu.memory_space<vmem>>, vector<1x1xf32>,
    } else {
    }
    return
  }
  func.func @transform_0(%arg0: i32) -> (i32, i32) {
    %c0_i32 = arith.constant 0 : i32
    %c0_i32_0 = arith.constant 0 : i32
    return %arg0, %c0_i32 : i32, i32
  }
  func.func @transform_1(%arg0: i32) -> (i32, i32) {
    %c0_i32 = arith.constant 0 : i32
    %c0_i32_0 = arith.constant 0 : i32
    return %arg0, %c0_i32 : i32, i32
  }
  func.func @transform_2(%arg0: i32) -> (i32, i32) {
    %c0_i32 = arith.constant 0 : i32
    %c0_i32_0 = arith.constant 0 : i32
    %c0_i32_1 = arith.constant 0 : i32
    return %c0_i32, %c0_i32_0 : i32, i32
  }
}

</mosaic_0001>

<llo_original>
// kernel: tpu_custom_call.1
$region0: #{tpu_custom_call.1}
  #allocation0 [shape = 'u32[]', space=smem, size = 0x4, offset = 0x4, fixed_abs, tag = 'smem constant byte address 0x4 - core index']
  #allocation1 [shape = 'u32[144,128]{1,0:T(1,128)}', space=vmem, size = 0x12000, scoped, tag = 'internal scratch']
  #allocation2 [shape = 'f32[1,1]{1,0:T(1,128)}', space=vmem, size = 0x200, scoped, tag = 'scratch operand']
  %s0 = inlined_call_operand.vmem [shape: f32[20,100], index: 0, kind: input, shape index: {}]
  %s1 = inlined_call_operand.vmem [shape: s32[20,1], index: 1, kind: input, shape index: {}]
  %s2 = inlined_call_operand.hbm [shape: f32[1,1], index: 2, kind: output, shape index: {}]
  %s3 = sld [smem:[#allocation0]]
  $region49: #{tpu_custom_call.1} parent=0
    _
  %s5 = ssub.s32 1, %s3
  %s6 = scalar_select 0, %s5, %s3
  $region1: #{tpu_custom_call.1} parent=0
    #allocation3 [shape = 'u8[512]{0}', space=vmem, size = 0x400, scoped, tag = 'output window, operand 0, single buffered']
    #allocation4 [shape = 's32[2]{0}', space=sflag, size = 0x8, scoped, tag = 'scoped memory for tpu_custom_call.1']
    %7 = vsyncpa [#allocation4], 0
    loop: start=0, step=1, limit=5
    $region2: #{tpu_custom_call.1} parent=1 // loop_pre_header
      _
    $region3: #{tpu_custom_call.1} parent=1 // loop_header
      %s9 = sphi 0, %s13
      %p10 = scmp.ge.s32.totalorder %s9, 5
      %s19 = sphi 0, %s21
      %s22 = sphi 0, %s19
      %s23 = sphi 0, %s22
      %s39 = sphi 0, %s23
      %s45 = sphi 0, %s47
      %s48 = sphi 0, %s45
      %s49 = sphi 0, %s48
      %s65 = sphi 0, %s49
      %s69 = sphi 0, %s69
      %s71 = sphi 0, %s69
      %s72 = sphi 0, %s71
      %s86 = sphi 0, %s72
    $region4: #{tpu_custom_call.1} parent=1 // loop_header_branch
      %12 = sbr.rel (%p10) target = $region8
    $region5: #{tpu_custom_call.1} parent=1 // loop_body
      %s14 = ssub.s32 %s9, 1
      %s15 = ssub.s32 %s9, 2
      %s16 = sadd.s32 %s9, 1
      %s17 = ssub.s32 %s9, %s16
      %p18 = scmp.eq.s32.totalorder %s17, 0
      %s20 = sadd.s32 %s19, 1
      %s21 = scalar_select %p18, %s19, %s20
      %p24 = pneg %p18
      %p25 = scmp.eq.s32.totalorder %s9, 2
      %p26 = por %p24, %p25
      %p27 = scmp.ne.s32.totalorder %s19, %s22
      %p28 = scmp.eq.s32.totalorder %s9, 0
      %p29 = por %p27, %p28
      %p30 = scmp.ne.s32.totalorder %s19, %s22
      %p31 = scmp.eq.s32.totalorder %s14, 2
      %p32 = por %p30, %p31
      %p33 = scmp.ne.s32.totalorder %s22, %s23
      %p34 = scmp.eq.s32.totalorder %s14, 0
      %p35 = por %p33, %p34
      %p36 = scmp.ne.s32.totalorder %s22, %s23
      %p37 = scmp.eq.s32.totalorder %s15, 2
      %p38 = por %p36, %p37
      %p40 = scmp.ne.s32.totalorder %s23, %s39
      %p41 = scmp.eq.s32.totalorder %s15, 0
      %p42 = por %p40, %p41
      %s43 = ssub.s32 %s9, %s16
      %p44 = scmp.eq.s32.totalorder %s43, 0
      %s46 = sadd.s32 %s45, 1
      %s47 = scalar_select %p44, %s45, %s46
      %p50 = pneg %p44
      %p51 = scmp.eq.s32.totalorder %s9, 2
      %p52 = por %p50, %p51
      %p53 = scmp.ne.s32.totalorder %s45, %s48
      %p54 = scmp.eq.s32.totalorder %s9, 0
      %p55 = por %p53, %p54
      %p56 = scmp.ne.s32.totalorder %s45, %s48
      %p57 = scmp.eq.s32.totalorder %s14, 2
      %p58 = por %p56, %p57
      %p59 = scmp.ne.s32.totalorder %s48, %s49
      %p60 = scmp.eq.s32.totalorder %s14, 0
      %p61 = por %p59, %p60
      %p62 = scmp.ne.s32.totalorder %s48, %s49
      %p63 = scmp.eq.s32.totalorder %s15, 2
      %p64 = por %p62, %p63
      %p66 = scmp.ne.s32.totalorder %s49, %s65
      %p67 = scmp.eq.s32.totalorder %s15, 0
      %p68 = por %p66, %p67
      %s70 = sadd.s32 %s69, 1
      %p73 = scmp.eq.s32.totalorder %s9, 2
      %p74 = scmp.ne.s32.totalorder %s69, %s71
      %p75 = scmp.eq.s32.totalorder %s9, 0
      %p76 = por %p74, %p75
      %p77 = scmp.ne.s32.totalorder %s69, %s71
      %p78 = scmp.eq.s32.totalorder %s14, 2
      %p79 = por %p77, %p78
      %p80 = scmp.ne.s32.totalorder %s71, %s72
      %p81 = scmp.eq.s32.totalorder %s14, 0
      %p82 = por %p80, %p81
      %p83 = scmp.ne.s32.totalorder %s71, %s72
      %p84 = scmp.eq.s32.totalorder %s15, 2
      %p85 = por %p83, %p84
      %p87 = scmp.ne.s32.totalorder %s72, %s86
      %p88 = scmp.eq.s32.totalorder %s15, 0
      %p89 = por %p87, %p88
      %p90 = scmp.le.s32.totalorder 1, %s9
      %p91 = scmp.lt.s32.totalorder %s9, 4
      %p92 = pnand %p90, %p91
      %p93 = pneg %p92
      // Predicated region
      $region9: #{tpu_custom_call.1} parent=5 // pred_check
        _
      $region10: #{tpu_custom_call.1} parent=5 // pred_check_branch
        %95 = sbr.rel (%p92) target = $region12
      $region11: #{tpu_custom_call.1} parent=5 // pred_region
        %s96 = ssub.s32 %s9, 1
      $region12: #{tpu_custom_call.1} parent=5 // pred_fallthru
        _
      %p97 = scmp.lt.s32.totalorder %s9, 3
      // Predicated region
      $region13: #{tpu_custom_call.1} parent=5 // pred_check
        %p98 = pneg %p97
      $region14: #{tpu_custom_call.1} parent=5 // pred_check_branch
        %100 = sbr.rel (%p98) target = $region16
      $region15: #{tpu_custom_call.1} parent=5 // pred_region
        // Predicated region
        $region17: #{tpu_custom_call.1} parent=15 // pred_check
          %p101 = pneg %p29
        $region18: #{tpu_custom_call.1} parent=15 // pred_check_branch
          %103 = sbr.rel (%p101) target = $region20
        $region19: #{tpu_custom_call.1} parent=15 // pred_region
          %p104 = scmp.lt.s32.totalorder %s9, 2
          %s105 = scalar_select %p104, %s9, 2
          %s106 = smul.addr %s105, 8
          %s107 = scalar_lea.vmem %s0, %s106
        $region20: #{tpu_custom_call.1} parent=15 // pred_fallthru
          _
        // Predicated region
        $region21: #{tpu_custom_call.1} parent=15 // pred_check
          %p108 = pneg %p55
        $region22: #{tpu_custom_call.1} parent=15 // pred_check_branch
          %110 = sbr.rel (%p108) target = $region24
        $region23: #{tpu_custom_call.1} parent=15 // pred_region
          %p111 = scmp.lt.s32.totalorder %s9, 2
          %s112 = scalar_select %p111, %s9, 2
          %s113 = smul.addr %s112, 8
          %s114 = scalar_lea.vmem %s1, %s113
        $region24: #{tpu_custom_call.1} parent=15 // pred_fallthru
          _
      $region16: #{tpu_custom_call.1} parent=5 // pred_fallthru
        _
      %p115 = scmp.le.s32.totalorder 1, %s9
      %p116 = scmp.lt.s32.totalorder %s9, 4
      %p117 = pnand %p115, %p116
      %p118 = pneg %p117
      // Predicated region
      $region25: #{tpu_custom_call.1} parent=5 // pred_check
        _
      $region26: #{tpu_custom_call.1} parent=5 // pred_check_branch
        %120 = sbr.rel (%p117) target = $region28
      $region27: #{tpu_custom_call.1} parent=5 // pred_region
        %s121 = ssub.s32 %s9, 1
        %p122 = scmp.lt.s32.totalorder %s14, 2
        %s123 = scalar_select %p122, %s14, 2
        %s124 = smul.addr %s123, 8
        %s125 = scalar_lea.vmem %s0, %s124
        %p126 = pneg %p35
        %p127 = pneg %p32
        %p128 = scmp.lt.s32.totalorder %s14, 2
        %s129 = scalar_select %p128, %s14, 2
        %s130 = smul.addr %s129, 8
        %s131 = scalar_lea.vmem %s1, %s130
        %p132 = pneg %p61
        %p133 = pneg %p58
        %p134 = pneg %p82
        %p135 = pneg %p79
        %p136 = scmp.lt.s32.totalorder %s14, 2
        %s137 = scalar_select %p136, %s14, 2
        %s138 = smul.addr %s137, 8
        %s139 = scalar_lea.vmem %s0, %s138
        %p140 = scmp.lt.s32.totalorder %s14, 2
        %s141 = scalar_select %p140, %s14, 2
        %s142 = smul.addr %s141, 8
        %s143 = scalar_lea.vmem %s1, %s142
        %p144 = scmp.eq.s32.totalorder %s14, 0
        // Predicated region
        $region29: #{tpu_custom_call.1} parent=27 // pred_check
          %p145 = pneg %p144
        $region30: #{tpu_custom_call.1} parent=27 // pred_check_branch
          %147 = sbr.rel (%p145) target = $region32
        $region31: #{tpu_custom_call.1} parent=27 // pred_region
          %vm148 = vcmask 0
          %149 = vst.msk [vmem:[#allocation2] sm:$0x1] %vm148, 0.0
        $region32: #{tpu_custom_call.1} parent=27 // pred_fallthru
          _
        %v150 = vld [vmem:[%s139] sm:$0xff]
        %v151 = vld [vmem:[%s143] sm:$0xff]
        %vm152 = vcmask 818176
        %v153 = vsel %vm152, %v150, -inf
        %154 = vmax.xlane.f32.xlu0 %v153
        %v155 = vpop.xlane.xlu0 %154
        %v156 = vsub.f32 %v150, %v155
        %v157 = vmul.f32 %v156, 1.442695
        %v158 = vpow.pop %v157
        %v159 = vsel %vm152, %v158, 0.0
        %160 = vadd.xlane.f32.xlu0 %v159
        %v161 = vpop.xlane.xlu0 %160
        %v162 = vlog2.pop %v161
        %v163 = vmul.f32 %v162, 0.6931472
        %v164 = vlaneseq
        %v165 = vand.u32 %v164, 127
        %166 = vset.pattern.permute.xlu0 0
        %167 = vperm.xlu0 %166, %v151
        %v168 = vpop.permute.xlu0 %167
        %vm169 = vcmp.eq.s32.totalorder %v165, %v168
        %v170 = vsel %vm169, %v156, 0.0
        %v171 = vsel %vm152, %v170, 0.0
        %172 = vadd.xlane.f32.xlu0 %v171
        %v173 = vpop.xlane.xlu0 %172
        %v174 = vsub.f32 %v163, %v173
        %s175 = smul.u32 %s14, 8
        %v176 = vlaneseq
        %v177 = vshrl.u32 %v176, 7
        %v178 = vstv %s175
        %v179 = vadd.s32 %v178, %v177
        %vm180 = vcmp.lt.s32.totalorder %v179, 20
        %v181 = vsel %vm180, %v174, 0.0
        %v182 = vld [vmem:[#allocation2] sm:$0x1]
        %vm183 = vcmask 7168
        %v184 = vsel %vm183, %v181, 0.0
        %185 = vadd.xlane.f32.xlu0 %v184
        %v186 = vpop.xlane.xlu0 %185
        %v187 = vrot.slane %v186, 4
        %v188 = vadd.f32 %v186, %v187
        %v189 = vrot.slane %v188, 2
        %v190 = vadd.f32 %v188, %v189
        %v191 = vrot.slane %v190, 1
        %v192 = vadd.f32 %v190, %v191
        %s193 = vtos %v192
        %v194 = vstv %s193
        %v195 = vadd.f32 %v182, %v194
        %vm196 = vcmask 0
        %197 = vst.msk [vmem:[#allocation2] sm:$0x1] %vm196, %v195
        %p198 = scmp.eq.s32.totalorder %s14, 2
        // Predicated region
        $region33: #{tpu_custom_call.1} parent=27 // pred_check
          %p199 = pneg %p198
        $region34: #{tpu_custom_call.1} parent=27 // pred_check_branch
          %201 = sbr.rel (%p199) target = $region36
        $region35: #{tpu_custom_call.1} parent=27 // pred_region
          %v202 = vld [vmem:[#allocation2] sm:$0x1]
          %v203 = vmul.f32 %v202, 0.05
          %204 = vst.msk [vmem:[#allocation3] sm:$0x1] %vm196, %v203
        $region36: #{tpu_custom_call.1} parent=27 // pred_fallthru
          _
        // Predicated region
        $region37: #{tpu_custom_call.1} parent=27 // pred_check
          %p205 = pneg %p79
        $region38: #{tpu_custom_call.1} parent=27 // pred_check_branch
          %207 = sbr.rel (%p205) target = $region40
        $region39: #{tpu_custom_call.1} parent=27 // pred_region
          %s209 = ssub.s32 16, 16
          %210 = vsyncadd [#allocation4], %s209
          %s212 = sshll.u32 [#allocation3], 4
          %s213 = int_to_ptr.vmem [resolvable:$true] %s212
          %215 = dma.vmem_to_hbm [thread:$0]  %s213, 16, %s2, [#allocation4]
        $region40: #{tpu_custom_call.1} parent=27 // pred_fallthru
          _
        // Predicated region
        $region41: #{tpu_custom_call.1} parent=27 // pred_check
          %p216 = pneg %p79
        $region42: #{tpu_custom_call.1} parent=27 // pred_check_branch
          %218 = sbr.rel (%p216) target = $region44
        $region43: #{tpu_custom_call.1} parent=27 // pred_region
          %219 = dma.done [#allocation4], 16
        $region44: #{tpu_custom_call.1} parent=27 // pred_fallthru
          _
      $region28: #{tpu_custom_call.1} parent=5 // pred_fallthru
        _
      %p220 = scmp.le.s32.totalorder 2, %s9
      // Predicated region
      $region45: #{tpu_custom_call.1} parent=5 // pred_check
        %p221 = pneg %p220
      $region46: #{tpu_custom_call.1} parent=5 // pred_check_branch
        %223 = sbr.rel (%p221) target = $region48
      $region47: #{tpu_custom_call.1} parent=5 // pred_region
        %s224 = ssub.s32 %s9, 2
      $region48: #{tpu_custom_call.1} parent=5 // pred_fallthru
        _
    $region6: #{tpu_custom_call.1} parent=1 // loop_footer
      %s13 = sadd.s32 1, %s9
    $region7: #{tpu_custom_call.1} parent=1 // loop_footer_branch
      %8 = sbr.rel target = $region3
    $region8: #{tpu_custom_call.1} parent=1 // loop_exit
      _
    %225 = vsyncpa [#allocation4], 1
    %s226 = scalar_lea.sflag [#allocation4], 1
    %227 = vsyncpa %s226, 1

</llo_original>
